<compile_context>
chip_gen: v5e
topology: v5e:2x2
jax: 0.10.0
libtpu: 0.0.40
codegen_flags: <defaults>
</compile_context>

<pallas_src>
import functools

import jax
import jax.numpy as jnp
from jax.experimental import pallas as pl
from jax.experimental.pallas import tpu as pltpu


def _mlp_kernel(xT_ref, w1_ref, w2_ref, b2_ref, w3_ref, b3_ref, o_ref):
    # Layer 1: (H1, F+1) @ (F+1, block_b) -> (H1, block_b); bias folded into the
    # matmul via the trailing ones row of x^T, so the epilogue is just ReLU.
    h1 = jnp.dot(w1_ref[...], xT_ref[...], preferred_element_type=jnp.float32)
    h1 = jnp.maximum(h1, 0.0)
    # Dropout(0.3) -> identity at inference.

    # Layer 2: (H2, H1) @ (H1, block_b) -> (H2, block_b).
    h2 = jnp.dot(w2_ref[...], h1, preferred_element_type=jnp.float32)
    h2 = jnp.maximum(h2 + b2_ref[...], 0.0)
    # Dropout(0.2) -> identity at inference.

    # Layer 3 (H2 -> 1): elementwise multiply (VPU) + sublane reduce (XLU)
    # instead of an N=1 MXU matmul.  b3 is a scalar read from SMEM.
    logits = jnp.sum(h2 * w3_ref[...], axis=0, keepdims=True) + b3_ref[0, 0]
    o_ref[...] = jax.nn.sigmoid(logits).astype(o_ref.dtype)  # lane-dense (1, block_b)


def _forward_from_transposed(xT, w1, b1, w2, b2, w3, b3, block_b):
    """xT: (F, B) feature-major input.  Returns lane-dense (1, B) probabilities."""
    F, B = xT.shape
    H1 = w1.shape[1]
    H2 = w2.shape[1]

    if block_b is None:
        b128 = pl.cdiv(B, 128) * 128
        # Large lane-dense tiles amortize ~0.35 us per-grid-step overhead.
        # Cap at 8192: safe under v5e's 16 MiB default scoped VMEM; on v6e/v7x
        # this can be swept up to 16384 (raise vmem_limit_bytes if doing so).
        block_b = min(8192, b128)
        if b128 >= 256:
            # Guarantee >= 2 grid steps so the "parallel" batch axis can be
            # sharded across v7x's 2 TensorCores (single-TC chips: harmless).
            block_b = min(block_b, pl.cdiv(b128 // 2, 128) * 128)
    block_b = max(128, (block_b // 128) * 128)

    Bp = pl.cdiv(B, block_b) * block_b
    xT = xT.astype(jnp.float32)
    if Bp != B:
        xT = jnp.pad(xT, ((0, 0), (0, Bp - B)))

    # Fold b1 into the first matmul: ones row on x^T, bias column on W1^T.
    xT_aug = jnp.concatenate([xT, jnp.ones((1, Bp), jnp.float32)], axis=0)   # (F+1, Bp)
    w1_aug = jnp.concatenate(
        [w1.T.astype(jnp.float32), b1.reshape(H1, 1).astype(jnp.float32)],
        axis=1)                                                              # (H1, F+1)

    w2T = w2.T.astype(jnp.float32)                   # (H2, H1)
    b2c = b2.reshape(H2, 1).astype(jnp.float32)      # (H2, 1)
    w3c = w3.reshape(H2, 1).astype(jnp.float32)      # (H2, 1)  VPU/XLU path
    b3c = b3.reshape(1, 1).astype(jnp.float32)       # scalar, SMEM

    Fa = F + 1
    grid = (Bp // block_b,)

    flops = 2 * Bp * (Fa * H1 + H1 * H2 + H2)
    bytes_accessed = (Bp * Fa * 4 + Bp * 4                       # x^T in, out
                      + (H1 * Fa + H2 * H1) * 4                  # weights
                      + (2 * H2 + 1) * 4)                        # b2, w3, b3
    cost = pl.CostEstimate(flops=flops, transcendentals=Bp,
                           bytes_accessed=bytes_accessed)

    outT = pl.pallas_call(
        _mlp_kernel,
        out_shape=jax.ShapeDtypeStruct((1, Bp), jnp.float32),
        grid_spec=pltpu.PrefetchScalarGridSpec(
            num_scalar_prefetch=0,
            grid=grid,
            in_specs=[
                pl.BlockSpec((Fa, block_b), lambda i: (0, i)),   # x^T batch tile
                pl.BlockSpec((H1, Fa), lambda i: (0, 0)),        # [W1^T | b1] (full)
                pl.BlockSpec((H2, H1), lambda i: (0, 0)),        # W2^T (full)
                pl.BlockSpec((H2, 1), lambda i: (0, 0)),         # b2
                pl.BlockSpec((H2, 1), lambda i: (0, 0)),         # w3 (VPU/XLU path)
                pl.BlockSpec(memory_space=pltpu.MemorySpace.SMEM),  # b3 scalar
            ],
            out_specs=pl.BlockSpec((1, block_b), lambda i: (0, i)),  # lane-dense
        ),
        compiler_params=pltpu.CompilerParams(
            # Plain "parallel" is sufficient for megacore sharding of the batch
            # axis; CORE_PARALLEL can be tried on v7x for explicit core split.
            dimension_semantics=("parallel",),
        ),
        cost_estimate=cost,
    )(xT_aug, w1_aug, w2T, b2c, w3c, b3c)

    return outT[:, :B]


@functools.partial(jax.jit, static_argnames=("block_b",))
def survival_nn_forward_transposed(xT, w1, b1, w2, b2, w3, b3, *, block_b=None):
    """Feature-major entry point: xT (F, B) -> (1, B).  Avoids the x.T / (B,1)
    relayout HBM passes when the producer/consumer can use this layout."""
    return _forward_from_transposed(xT, w1, b1, w2, b2, w3, b3, block_b)


@functools.partial(jax.jit, static_argnames=("block_b",))
def survival_nn_forward(x, w1, b1, w2, b2, w3, b3, *, block_b=None):
    """Fused forward pass of SurvivalNN (PyTorch-shaped contract).

    x : (B, input_size) float32
    w1: (input_size, hidden)      b1: (1, hidden)
    w2: (hidden, hidden // 2)     b2: (1, hidden // 2)
    w3: (hidden // 2, 1)          b3: (1, 1)
    returns (B, 1) float32
    """
    outT = _forward_from_transposed(x.T, w1, b1, w2, b2, w3, b3, block_b)
    return outT[0, :].reshape(-1, 1)


def init_params(key, input_size=20, hidden_size=64):
    """Deterministic parameter init (Kaiming-uniform-ish, like nn.Linear default)."""
    k1, k2, k3, k4, k5, k6 = jax.random.split(key, 6)
    h2 = hidden_size // 2

    def lin_init(kw, kb, fan_in, fan_out):
        bound = 1.0 / jnp.sqrt(fan_in)
        # stored as (in, out) so x @ W + b == PyTorch x @ W.T + b with W=(out,in)
        w = jax.random.uniform(kw, (fan_in, fan_out), jnp.float32, -bound, bound)
        b = jax.random.uniform(kb, (1, fan_out), jnp.float32, -bound, bound)
        return w, b

    w1, b1 = lin_init(k1, k2, input_size, hidden_size)
    w2, b2 = lin_init(k3, k4, hidden_size, h2)
    w3, b3 = lin_init(k5, k6, h2, 1)
    return w1, b1, w2, b2, w3, b3


def reference_forward(x, w1, b1, w2, b2, w3, b3):
    """Pure-JAX f32 reference (inference-mode dropout = identity)."""
    h1 = jnp.maximum(x @ w1 + b1, 0.0)
    h2 = jnp.maximum(h1 @ w2 + b2, 0.0)
    return jax.nn.sigmoid(h2 @ w3 + b3)


if __name__ == "__main__":
    key = jax.random.PRNGKey(0)
    kx, kp, kx2 = jax.random.split(key, 3)

    batch, input_size, hidden_size = 8, 20, 64
    x = jax.random.normal(kx, (batch, input_size), dtype=jnp.float32)
    params = init_params(kp, input_size=input_size, hidden_size=hidden_size)

    # Small demo batch (padded internally to a single 128-lane tile).
    out = survival_nn_forward(x, *params)
    out = jax.block_until_ready(out)
    assert out.shape == (batch, 1), out.shape

    ref = reference_forward(x, *params)
    assert jnp.allclose(out, ref, atol=1e-4, rtol=0), "mismatch vs f32 reference"

    # Ragged batch + multi-step grid path (3 parallel grid steps, padding sliced off).
    batch2 = 300
    x2 = jax.random.normal(kx2, (batch2, input_size), dtype=jnp.float32)
    out2 = jax.block_until_ready(survival_nn_forward(x2, *params, block_b=128))
    ref2 = reference_forward(x2, *params)
    assert out2.shape == (batch2, 1), out2.shape
    assert jnp.allclose(out2, ref2, atol=1e-4, rtol=0), "mismatch on multi-tile path"

    # Feature-major entry point (skips the wrapper transpose / output reshape).
    out3 = jax.block_until_ready(survival_nn_forward_transposed(x2.T, *params))
    assert out3.shape == (1, batch2), out3.shape
    assert jnp.allclose(out3[0, :, None], ref2, atol=1e-4, rtol=0), "mismatch on transposed path"

    print("KERNEL_OK")
</pallas_src>

<mosaic_0001>
module attributes {stable_mosaic.version = 11 : i64} {
  func.func @_mlp_kernel(%arg0: i32, %arg1: memref<21x128xf32, #tpu.memory_space<vmem>>, %arg2: memref<64x21xf32, #tpu.memory_space<vmem>>, %arg3: memref<32x64xf32, #tpu.memory_space<vmem>>, %arg4: memref<32x1xf32, #tpu.memory_space<vmem>>, %arg5: memref<32x1xf32, #tpu.memory_space<vmem>>, %arg6: memref<1x1xf32, #tpu.memory_space<smem>>, %arg7: memref<1x128xf32, #tpu.memory_space<vmem>>) attributes {dimension_semantics = [#tpu.dimension_semantics<parallel>], iteration_bounds = array<i64: 1>, scalar_prefetch = 0 : i64, scratch_operands = 0 : i64, tpu.core_type = #tpu.core_type<tc>, window_params = [{transform_indices = @transform_0, window_bounds = array<i64: 21, 128>}, {pipeline_mode = #tpu.pipeline_mode<synchronous>, transform_indices = @transform_1, window_bounds = array<i64: 64, 21>}, {pipeline_mode = #tpu.pipeline_mode<synchronous>, transform_indices = @transform_2, window_bounds = array<i64: 32, 64>}, {pipeline_mode = #tpu.pipeline_mode<synchronous>, transform_indices = @transform_3, window_bounds = array<i64: 32, 1>}, {pipeline_mode = #tpu.pipeline_mode<synchronous>, transform_indices = @transform_4, window_bounds = array<i64: 32, 1>}, {transform_indices = @transform_5, window_bounds = array<i64: 1, 1>}, {transform_indices = @transform_6, window_bounds = array<i64: 1, 128>}]} {
    %c0 = arith.constant 0 : index
    %c0_0 = arith.constant 0 : index
    %0 = vector.load %arg2[%c0, %c0_0] : memref<64x21xf32, #tpu.memory_space<vmem>>, vector<64x21xf32>
    %c0_1 = arith.constant 0 : index
    %c0_2 = arith.constant 0 : index
    %1 = vector.load %arg1[%c0_1, %c0_2] : memref<21x128xf32, #tpu.memory_space<vmem>>, vector<21x128xf32>
    %cst = arith.constant dense<0.000000e+00> : vector<64x128xf32>
    %2 = tpu.matmul %0, %1, %cst {dimension_numbers = #tpu.dot_dimension_numbers<[1], [0], [0], [1], [0, 0, 1, 1], [], []>} : vector<64x21xf32>, vector<21x128xf32>, vector<64x128xf32> -> vector<64x128xf32>
    %cst_3 = arith.constant 0.000000e+00 : f32
    %3 = vector.broadcast %cst_3 : f32 to vector<64x128xf32>
    %4 = arith.maximumf %2, %3 : vector<64x128xf32>
    %c0_4 = arith.constant 0 : index
    %c0_5 = arith.constant 0 : index
    %5 = vector.load %arg3[%c0_4, %c0_5] : memref<32x64xf32, #tpu.memory_space<vmem>>, vector<32x64xf32>
    %cst_6 = arith.constant dense<0.000000e+00> : vector<32x128xf32>
    %6 = tpu.matmul %5, %4, %cst_6 {dimension_numbers = #tpu.dot_dimension_numbers<[1], [0], [0], [1], [0, 0, 1, 1], [], []>} : vector<32x64xf32>, vector<64x128xf32>, vector<32x128xf32> -> vector<32x128xf32>
    %c0_7 = arith.constant 0 : index
    %c0_8 = arith.constant 0 : index
    %7 = vector.load %arg4[%c0_7, %c0_8] : memref<32x1xf32, #tpu.memory_space<vmem>>, vector<32x1xf32>
    %8 = vector.broadcast %7 : vector<32x1xf32> to vector<32x128xf32>
    %9 = arith.addf %6, %8 : vector<32x128xf32>
    %cst_9 = arith.constant 0.000000e+00 : f32
    %10 = vector.broadcast %cst_9 : f32 to vector<32x128xf32>
    %11 = arith.maximumf %9, %10 : vector<32x128xf32>
    %c0_10 = arith.constant 0 : index
    %c0_11 = arith.constant 0 : index
    %12 = vector.load %arg5[%c0_10, %c0_11] : memref<32x1xf32, #tpu.memory_space<vmem>>, vector<32x1xf32>
    %13 = vector.broadcast %12 : vector<32x1xf32> to vector<32x128xf32>
    %14 = arith.mulf %11, %13 : vector<32x128xf32>
    %cst_12 = arith.constant dense<0.000000e+00> : vector<128xf32>
    %15 = vector.multi_reduction <add>, %14, %cst_12 [0] : vector<32x128xf32> to vector<128xf32>
    %16 = vector.shape_cast %15 : vector<128xf32> to vector<1x128xf32>
    %c0_13 = arith.constant 0 : index
    %c0_14 = arith.constant 0 : index
    %17 = memref.load %arg6[%c0_13, %c0_14] : memref<1x1xf32, #tpu.memory_space<smem>>
    %18 = vector.broadcast %17 : f32 to vector<1x128xf32>
    %19 = arith.addf %16, %18 : vector<1x128xf32>
    %20 = arith.negf %19 : vector<1x128xf32>
    %21 = math.exp %20 : vector<1x128xf32>
    %cst_15 = arith.constant 1.000000e+00 : f32
    %22 = vector.broadcast %cst_15 : f32 to vector<1x128xf32>
    %23 = arith.addf %22, %21 : vector<1x128xf32>
    %24 = arith.divf %22, %23 : vector<1x128xf32>
    %c0_16 = arith.constant 0 : index
    %c0_17 = arith.constant 0 : index
    %25 = vector.load %arg7[%c0_16, %c0_17] : memref<1x128xf32, #tpu.memory_space<vmem>>, vector<1x128xf32>
    tpu.vector_store %arg7[%c0_16, %c0_17], %24 {strides = array<i32>} : memref<1x128xf32, #tpu.memory_space<vmem>>, vector<1x128xf32>,
    return
  }
  func.func @transform_0(%arg0: i32) -> (i32, i32) {
    %c0_i32 = arith.constant 0 : i32
    %c0_i32_0 = arith.constant 0 : i32
    return %c0_i32, %arg0 : i32, i32
  }
  func.func @transform_1(%arg0: i32) -> (i32, i32) {
    %c0_i32 = arith.constant 0 : i32
    %c0_i32_0 = arith.constant 0 : i32
    %c0_i32_1 = arith.constant 0 : i32
    return %c0_i32, %c0_i32_0 : i32, i32
  }
  func.func @transform_2(%arg0: i32) -> (i32, i32) {
    %c0_i32 = arith.constant 0 : i32
    %c0_i32_0 = arith.constant 0 : i32
    %c0_i32_1 = arith.constant 0 : i32
    return %c0_i32, %c0_i32_0 : i32, i32
  }
  func.func @transform_3(%arg0: i32) -> (i32, i32) {
    %c0_i32 = arith.constant 0 : i32
    %c0_i32_0 = arith.constant 0 : i32
    %c0_i32_1 = arith.constant 0 : i32
    return %c0_i32, %c0_i32_0 : i32, i32
  }
  func.func @transform_4(%arg0: i32) -> (i32, i32) {
    %c0_i32 = arith.constant 0 : i32
    %c0_i32_0 = arith.constant 0 : i32
    %c0_i32_1 = arith.constant 0 : i32
    return %c0_i32, %c0_i32_0 : i32, i32
  }
  func.func @transform_5(%arg0: i32) -> (i32, i32) {
    %c0_i32 = arith.constant 0 : i32
    %c0_i32_0 = arith.constant 0 : i32
    %c0_i32_1 = arith.constant 0 : i32
    return %c0_i32, %c0_i32_0 : i32, i32
  }
  func.func @transform_6(%arg0: i32) -> (i32, i32) {
    %c0_i32 = arith.constant 0 : i32
    %c0_i32_0 = arith.constant 0 : i32
    return %c0_i32, %arg0 : i32, i32
  }
}

</mosaic_0001>

<llo_original>
// kernel: survival_nn_forward.1
$region0: #{survival_nn_forward.1}
  #allocation0 [shape = 'u32[]', space=smem, size = 0x4, offset = 0x4, fixed_abs, tag = 'smem constant byte address 0x4 - core index']
  #allocation1 [shape = 'u32[72,128]{1,0:T(1,128)}', space=vmem, size = 0x9000, scoped, tag = 'internal scratch']
  #allocation2 [shape = 'f32[1,1]{1,0:T(1,128)S(6)}', space=smem, size = 0x200, scoped, tag = 'scoped memory for survival_nn_forward.1']
  %s0 = inlined_call_operand.vmem [shape: f32[21,128], index: 0, kind: input, shape index: {}]
  %s1 = inlined_call_operand.vmem [shape: f32[64,21], index: 1, kind: input, shape index: {}]
  %s2 = inlined_call_operand.vmem [shape: f32[32,64], index: 2, kind: input, shape index: {}]
  %s3 = inlined_call_operand.vmem [shape: f32[32,1], index: 3, kind: input, shape index: {}]
  %s4 = inlined_call_operand.vmem [shape: f32[32,1], index: 4, kind: input, shape index: {}]
  %s5 = inlined_call_operand.<no memory space> [shape: f32[1,1], index: 5, kind: input, shape index: {}]
  %s6 = inlined_call_operand.vmem [shape: f32[1,128], index: 6, kind: output, shape index: {}]
  %s7 = sld [smem:[#allocation0]]
  $region34: #{survival_nn_forward.1} parent=0
    _
  %s9 = ssub.s32 1, %s7
  %s10 = scalar_select 0, %s9, %s7
  %11 = sst [smem:[#allocation2]] %s5
  // Predicated region
  $region2: #{survival_nn_forward.1} parent=0 // pred_check
    _
  $region3: #{survival_nn_forward.1} parent=0 // pred_check_branch
    %13 = sbr.rel (0) target = $region5
  $region4: #{survival_nn_forward.1} parent=0 // pred_region
    _
  $region5: #{survival_nn_forward.1} parent=0 // pred_fallthru
    _
  // Predicated region
  $region6: #{survival_nn_forward.1} parent=0 // pred_check
    _
  $region7: #{survival_nn_forward.1} parent=0 // pred_check_branch
    %15 = sbr.rel (0) target = $region9
  $region8: #{survival_nn_forward.1} parent=0 // pred_region
    _
  $region9: #{survival_nn_forward.1} parent=0 // pred_fallthru
    _
  // Predicated region
  $region10: #{survival_nn_forward.1} parent=0 // pred_check
    _
  $region11: #{survival_nn_forward.1} parent=0 // pred_check_branch
    %17 = sbr.rel (0) target = $region13
  $region12: #{survival_nn_forward.1} parent=0 // pred_region
    _
  $region13: #{survival_nn_forward.1} parent=0 // pred_fallthru
    _
  // Predicated region
  $region14: #{survival_nn_forward.1} parent=0 // pred_check
    _
  $region15: #{survival_nn_forward.1} parent=0 // pred_check_branch
    %19 = sbr.rel (0) target = $region17
  $region16: #{survival_nn_forward.1} parent=0 // pred_region
    _
  $region17: #{survival_nn_forward.1} parent=0 // pred_fallthru
    _
  // Predicated region
  $region18: #{survival_nn_forward.1} parent=0 // pred_check
    _
  $region19: #{survival_nn_forward.1} parent=0 // pred_check_branch
    %21 = sbr.rel (0) target = $region21
  $region20: #{survival_nn_forward.1} parent=0 // pred_region
    _
  $region21: #{survival_nn_forward.1} parent=0 // pred_fallthru
    _
  // Predicated region
  $region22: #{survival_nn_forward.1} parent=0 // pred_check
    _
  $region23: #{survival_nn_forward.1} parent=0 // pred_check_branch
    %23 = sbr.rel (0) target = $region25
  $region24: #{survival_nn_forward.1} parent=0 // pred_region
    _
  $region25: #{survival_nn_forward.1} parent=0 // pred_fallthru
    _
  %v24 = vld [vmem:[%s1] sm:$0xff]
  %v25 = vld [vmem:[%s1 + $0x8] sm:$0xff]
  %v26 = vld [vmem:[%s1 + $0x10] sm:$0xff]
  %v27 = vld [vmem:[%s1 + $0x18] sm:$0xff]
  %v28 = vld [vmem:[%s1 + $0x20] sm:$0xff]
  %v29 = vld [vmem:[%s1 + $0x28] sm:$0xff]
  %v30 = vld [vmem:[%s1 + $0x30] sm:$0xff]
  %v31 = vld [vmem:[%s1 + $0x38] sm:$0xff]
  %v32 = vld [vmem:[%s0] sm:$0xff]
  %v33 = vld [vmem:[%s0 + $0x8] sm:$0xff]
  %v34 = vld [vmem:[%s0 + $0x10] sm:$0x1f]
  %vm35 = vcmask 171008
  %v37 = vsel %vm35, %v24, 0
  %v40 = vsel %vm35, %v25, 0
  %v43 = vsel %vm35, %v26, 0
  %v46 = vsel %vm35, %v27, 0
  %v49 = vsel %vm35, %v28, 0
  %v52 = vsel %vm35, %v29, 0
  %v55 = vsel %vm35, %v30, 0
  %v58 = vsel %vm35, %v31, 0
  %vm60 = vcmask 1044480
  %v62 = vsel %vm60, %v34, 0
  %64 = vmatpush.msra.mxu0 0.0
  %65 = vmatpush.msra.mxu0 0.0
  %66 = vmatpush.msra.mxu0 0.0
  %67 = vmatpush.msra.mxu0 0.0
  %68 = vmatpush.msra.mxu0 0.0
  %69 = vmatpush.msra.mxu0 0.0
  %70 = vmatpush.msra.mxu0 0.0
  %71 = vmatpush.msra.mxu0 0.0
  %72 = vmatpush.msra.mxu0 0.0
  %73 = vmatpush.msra.mxu0 0.0
  %74 = vmatpush.msra.mxu0 0.0
  %75 = vmatpush.msra.mxu0 0.0
  %76 = vmatpush.msra.mxu0 0.0
  %77 = vmatpush.msra.mxu0 %v62
  %78 = vmatpush.msra.mxu0 %v33
  %79 = vmatpush.msra.mxu0 %v32
  %80 = vmatmul.f32.gmra.mxu0 %v37
  %v81 = vpop.f32.mrf.mxu0
  %v82 = vadd.f32 0.0, %v81
  %83 = vmatmul.f32.gmra.mxu0 %v40
  %v84 = vpop.f32.mrf.mxu0
  %v85 = vadd.f32 0.0, %v84
  %86 = vmatmul.f32.gmra.mxu0 %v43
  %v87 = vpop.f32.mrf.mxu0
  %v88 = vadd.f32 0.0, %v87
  %89 = vmatmul.f32.gmra.mxu0 %v46
  %v90 = vpop.f32.mrf.mxu0
  %v91 = vadd.f32 0.0, %v90
  %92 = vmatmul.f32.gmra.mxu0 %v49
  %v93 = vpop.f32.mrf.mxu0
  %v94 = vadd.f32 0.0, %v93
  %95 = vmatmul.f32.gmra.mxu0 %v52
  %v96 = vpop.f32.mrf.mxu0
  %v97 = vadd.f32 0.0, %v96
  %98 = vmatmul.f32.gmra.mxu0 %v55
  %v99 = vpop.f32.mrf.mxu0
  %v100 = vadd.f32 0.0, %v99
  %101 = vmatmul.f32.gmra.mxu0 %v58
  %v102 = vpop.f32.mrf.mxu0
  %v103 = vadd.f32 0.0, %v102
  %104 = vdwg.mxu0
  %v105 = vmax.f32 %v82, 0.0
  %v106 = vmax.f32 %v85, 0.0
  %v107 = vmax.f32 %v88, 0.0
  %v108 = vmax.f32 %v91, 0.0
  %v109 = vmax.f32 %v94, 0.0
  %v110 = vmax.f32 %v97, 0.0
  %v111 = vmax.f32 %v100, 0.0
  %v112 = vmax.f32 %v103, 0.0
  %v113 = vld [vmem:[%s2] sm:$0xff]
  %v114 = vld [vmem:[%s2 + $0x8] sm:$0xff]
  %v115 = vld [vmem:[%s2 + $0x10] sm:$0xff]
  %v116 = vld [vmem:[%s2 + $0x18] sm:$0xff]
  %v117 = vld [vmem:[%s3] sm:$0xff]
  %v118 = vld [vmem:[%s3 + $0x8] sm:$0xff]
  %v119 = vld [vmem:[%s3 + $0x10] sm:$0xff]
  %v120 = vld [vmem:[%s3 + $0x18] sm:$0xff]
  %122 = vset.pattern.permute.xlu0 0
  %123 = vperm.xlu0 %122, %v117
  %v124 = vpop.permute.xlu0 %123
  %127 = vset.pattern.permute.xlu0 0
  %128 = vperm.xlu0 %127, %v118
  %v129 = vpop.permute.xlu0 %128
  %132 = vset.pattern.permute.xlu0 0
  %133 = vperm.xlu0 %132, %v119
  %v134 = vpop.permute.xlu0 %133
  %137 = vset.pattern.permute.xlu0 0
  %138 = vperm.xlu0 %137, %v120
  %v139 = vpop.permute.xlu0 %138
  %vm141 = vcmask 523264
  %v143 = vsel %vm141, %v113, 0
  %v146 = vsel %vm141, %v114, 0
  %v149 = vsel %vm141, %v115, 0
  %v152 = vsel %vm141, %v116, 0
  %154 = vmatpush.msra.mxu0 0.0
  %155 = vmatpush.msra.mxu0 0.0
  %156 = vmatpush.msra.mxu0 0.0
  %157 = vmatpush.msra.mxu0 0.0
  %158 = vmatpush.msra.mxu0 0.0
  %159 = vmatpush.msra.mxu0 0.0
  %160 = vmatpush.msra.mxu0 0.0
  %161 = vmatpush.msra.mxu0 0.0
  %162 = vmatpush.msra.mxu0 %v112
  %163 = vmatpush.msra.mxu0 %v111
  %164 = vmatpush.msra.mxu0 %v110
  %165 = vmatpush.msra.mxu0 %v109
  %166 = vmatpush.msra.mxu0 %v108
  %167 = vmatpush.msra.mxu0 %v107
  %168 = vmatpush.msra.mxu0 %v106
  %169 = vmatpush.msra.mxu0 %v105
  %170 = vmatmul.f32.gmra.mxu0 %v143
  %v171 = vpop.f32.mrf.mxu0
  %v172 = vadd.f32 %v124, %v171
  %173 = vmatmul.f32.gmra.mxu0 %v146
  %v174 = vpop.f32.mrf.mxu0
  %v175 = vadd.f32 %v129, %v174
  %176 = vmatmul.f32.gmra.mxu0 %v149
  %v177 = vpop.f32.mrf.mxu0
  %v178 = vadd.f32 %v134, %v177
  %179 = vmatmul.f32.gmra.mxu0 %v152
  %v180 = vpop.f32.mrf.mxu0
  %v181 = vadd.f32 %v139, %v180
  %182 = vdwg.mxu0
  %v183 = vmax.f32 %v172, 0.0
  %v184 = vmax.f32 %v175, 0.0
  %v185 = vmax.f32 %v178, 0.0
  %v186 = vmax.f32 %v181, 0.0
  %v187 = vld [vmem:[%s4] sm:$0xff]
  %v188 = vld [vmem:[%s4 + $0x8] sm:$0xff]
  %v189 = vld [vmem:[%s4 + $0x10] sm:$0xff]
  %v190 = vld [vmem:[%s4 + $0x18] sm:$0xff]
  %192 = vset.pattern.permute.xlu0 0
  %193 = vperm.xlu0 %192, %v187
  %v194 = vpop.permute.xlu0 %193
  %197 = vset.pattern.permute.xlu0 0
  %198 = vperm.xlu0 %197, %v188
  %v199 = vpop.permute.xlu0 %198
  %202 = vset.pattern.permute.xlu0 0
  %203 = vperm.xlu0 %202, %v189
  %v204 = vpop.permute.xlu0 %203
  %207 = vset.pattern.permute.xlu0 0
  %208 = vperm.xlu0 %207, %v190
  %v209 = vpop.permute.xlu0 %208
  %v211 = vmul.f32 %v183, %v194
  %v212 = vmul.f32 %v184, %v199
  %v213 = vmul.f32 %v185, %v204
  %v214 = vmul.f32 %v186, %v209
  %v215 = vadd.f32 %v211, %v212
  %v216 = vadd.f32 %v215, %v213
  %v217 = vadd.f32 %v216, %v214
  %v218 = vrot.slane %v217, 4
  %v219 = vadd.f32 %v217, %v218
  %v220 = vrot.slane %v219, 2
  %v221 = vadd.f32 %v219, %v220
  %v222 = vrot.slane %v221, 1
  %v223 = vadd.f32 %v221, %v222
  %s224 = sld [smem:[#allocation2]]
  %v225 = vstv %s224
  %v226 = vadd.f32 %v223, %v225
  %v227 = vxor.u32 %v226, 2147483648
  %v228 = vmul.f32 %v227, 1.442695
  %v229 = vpow.pop %v228
  %v230 = vadd.f32 %v229, 1.0
  %v231 = vrcp.pop %v230
  %v232 = vmul.f32 %v230, %v231
  %v233 = vsub.f32 1.0, %v232
  %v234 = vmul.f32 %v231, %v233
  %v235 = vadd.f32 %v231, %v234
  %vm236 = vweird.f32 %v230
  %vm237 = vweird.f32 %v231
  %vm238 = vmor %vm236, %vm237
  %v239 = vsel %vm238, %v231, %v235
  %v240 = vand.u32 2147483647, %v230
  %vm241 = vcmp.eq.f32.partialorder %v240, 8.507059e+37
  %v242 = vand.u32 %v230, 2147483648
  %v243 = vor.u32 1.1754944e-38, %v242
  %v244 = vsel %vm241, %v243, %v239
  %v245 = vmul.f32 1.0, %v244
  %246 = vst [vmem:[%s6] sm:$0x1] %v245
  // Predicated region
  $region26: #{survival_nn_forward.1} parent=0 // pred_check
    _
  $region27: #{survival_nn_forward.1} parent=0 // pred_check_branch
    %248 = sbr.rel (0) target = $region29
  $region28: #{survival_nn_forward.1} parent=0 // pred_region
    _
  $region29: #{survival_nn_forward.1} parent=0 // pred_fallthru
    _
  // Predicated region
  $region30: #{survival_nn_forward.1} parent=0 // pred_check
    _
  $region31: #{survival_nn_forward.1} parent=0 // pred_check_branch
    %250 = sbr.rel (0) target = $region33
  $region32: #{survival_nn_forward.1} parent=0 // pred_region
    _
  $region33: #{survival_nn_forward.1} parent=0 // pred_fallthru
    _

</llo_original>
